<compile_context>
chip_gen: v6e
topology: v6e:2x2x1
jax: 0.10.0
libtpu: 0.0.40
codegen_flags: <defaults>
</compile_context>

<pallas_src>
import functools
import math

import jax
import jax.numpy as jnp
from jax import lax
from jax.experimental import pallas as pl
from jax.experimental.pallas import tpu as pltpu


# --------------------------------------------------------------------------- #
# Tiling configuration (generation aware).
# --------------------------------------------------------------------------- #
def _device_kind():
    try:
        return jax.devices()[0].device_kind.lower()
    except Exception:
        return ""


_KIND = _device_kind()
# v5e/v5p have 128-wide MXUs -> 128-wide M/N tiles; v6e/v7x have 256-wide MXUs.
_MM_TM = 128 if "v5" in _KIND else 256
_MM_TN = _MM_TM
_MM_TK = 512      # bf16 operands keep (tm, 512) blocks ~256 KiB -> well under scoped VMEM
_T_ELEM = 512     # [N,N] elementwise kernels: 512x512 f32 blocks (~85% HBM roofline)
_LANE = 128


def _round_up(x, m):
    return ((x + m - 1) // m) * m


def _pick_block(dim, tile):
    """Largest legal block: full dim if it fits the tile, else `tile` (dim padded)."""
    if dim <= tile:
        return dim, dim
    return tile, _round_up(dim, tile)


def _pad2d(x, shape):
    pr = shape[0] - x.shape[0]
    pc = shape[1] - x.shape[1]
    if pr == 0 and pc == 0:
        return x
    return jnp.pad(x, ((0, pr), (0, pc)))


# --------------------------------------------------------------------------- #
# Pallas kernel 1: generic tiled matmul (bf16 in / f32 acc), optional transposed
# operands realized via BlockSpec index maps (no HBM transpose pass).
# --------------------------------------------------------------------------- #
_DOT_DIMS = {
    (False, False): (((1,), (0,)), ((), ())),
    (True, False): (((0,), (0,)), ((), ())),
    (False, True): (((1,), (1,)), ((), ())),
    (True, True): (((0,), (1,)), ((), ())),
}


def _make_matmul_kernel(trans_a, trans_b):
    dims = _DOT_DIMS[(trans_a, trans_b)]

    def kernel(a_ref, b_ref, o_ref, acc_ref):
        @pl.when(pl.program_id(2) == 0)
        def _():
            acc_ref[...] = jnp.zeros_like(acc_ref)

        acc_ref[...] += lax.dot_general(a_ref[...], b_ref[...], dims,
                                        preferred_element_type=jnp.float32)

        @pl.when(pl.program_id(2) == pl.num_programs(2) - 1)
        def _():
            o_ref[...] = acc_ref[...].astype(o_ref.dtype)

    return kernel


_MM_KERNELS = {flags: _make_matmul_kernel(*flags) for flags in _DOT_DIMS}


def matmul_pallas(a, b, trans_a=False, trans_b=False):
    """op(a) @ op(b) with bf16 MXU operands, f32 accumulation, f32 output."""
    a = a.astype(jnp.bfloat16)
    b = b.astype(jnp.bfloat16)
    if trans_a:
        ka, m = a.shape
    else:
        m, ka = a.shape
    if trans_b:
        n, kb = b.shape
    else:
        kb, n = b.shape
    assert ka == kb
    tm, mp = _pick_block(m, _MM_TM)
    tn, npd = _pick_block(n, _MM_TN)
    tk, kp = _pick_block(ka, _MM_TK)
    if trans_a:
        a = _pad2d(a, (kp, mp))
        a_spec = pl.BlockSpec((tk, tm), lambda i, j, k: (k, i))
    else:
        a = _pad2d(a, (mp, kp))
        a_spec = pl.BlockSpec((tm, tk), lambda i, j, k: (i, k))
    if trans_b:
        b = _pad2d(b, (npd, kp))
        b_spec = pl.BlockSpec((tn, tk), lambda i, j, k: (j, k))
    else:
        b = _pad2d(b, (kp, npd))
        b_spec = pl.BlockSpec((tk, tn), lambda i, j, k: (k, j))
    out = pl.pallas_call(
        _MM_KERNELS[(trans_a, trans_b)],
        out_shape=jax.ShapeDtypeStruct((mp, npd), jnp.float32),
        grid_spec=pltpu.PrefetchScalarGridSpec(
            num_scalar_prefetch=0,
            grid=(mp // tm, npd // tn, kp // tk),
            in_specs=[a_spec, b_spec],
            out_specs=pl.BlockSpec((tm, tn), lambda i, j, k: (i, j)),
            scratch_shapes=[pltpu.VMEM((tm, tn), jnp.float32)]),
        compiler_params=pltpu.CompilerParams(
            dimension_semantics=("parallel", "parallel", "arbitrary")),
    )(a, b)
    if (mp, npd) != (m, n):
        out = out[:m, :n]
    return out


# --------------------------------------------------------------------------- #
# Pallas kernel 2: fused GCN layer  out = (A @ H) @ W.
# A@H accumulated over the K grid axis into f32 scratch; tiny W applied in the
# epilogue.  H/W/out are zero-padded to 128 lanes for lane-dense loads/stores.
# --------------------------------------------------------------------------- #
def _gcn_layer_kernel(a_ref, h_ref, w_ref, o_ref, acc_ref):
    @pl.when(pl.program_id(1) == 0)
    def _():
        acc_ref[...] = jnp.zeros_like(acc_ref)

    acc_ref[...] += jnp.dot(a_ref[...], h_ref[...],
                            preferred_element_type=jnp.float32)

    @pl.when(pl.program_id(1) == pl.num_programs(1) - 1)
    def _():
        o_ref[...] = jnp.dot(acc_ref[...], w_ref[...],
                             preferred_element_type=jnp.float32)


def _gcn_layer_fwd_impl(a, h, w):
    n, kdim = a.shape
    _, f = h.shape
    _, c = w.shape
    fp = _round_up(f, _LANE)
    cp = _round_up(c, _LANE)
    tm, mp = _pick_block(n, _MM_TM)
    tk, kp = _pick_block(kdim, _MM_TK)
    a_p = _pad2d(a.astype(jnp.bfloat16), (mp, kp))
    h_p = _pad2d(h.astype(jnp.bfloat16), (kp, fp))
    w_p = _pad2d(w.astype(jnp.float32), (fp, cp))
    out = pl.pallas_call(
        _gcn_layer_kernel,
        out_shape=jax.ShapeDtypeStruct((mp, cp), jnp.float32),
        grid_spec=pltpu.PrefetchScalarGridSpec(
            num_scalar_prefetch=0,
            grid=(mp // tm, kp // tk),
            in_specs=[pl.BlockSpec((tm, tk), lambda i, k: (i, k)),
                      pl.BlockSpec((tk, fp), lambda i, k: (k, 0)),
                      pl.BlockSpec((fp, cp), lambda i, k: (0, 0))],
            out_specs=pl.BlockSpec((tm, cp), lambda i, k: (i, 0)),
            scratch_shapes=[pltpu.VMEM((tm, fp), jnp.float32)]),
        compiler_params=pltpu.CompilerParams(
            dimension_semantics=("parallel", "arbitrary")),
    )(a_p, h_p, w_p)
    if (mp, cp) != (n, c):
        out = out[:n, :c]
    return out


@jax.custom_vjp
def gcn_layer(a, h, w):
    return _gcn_layer_fwd_impl(a, h, w)


def _gcn_layer_vjp_fwd(a, h, w):
    return _gcn_layer_fwd_impl(a, h, w), (a, h, w)


def _gcn_layer_vjp_bwd(res, g):
    a, h, w = res
    hw = matmul_pallas(h, w)                     # [N, C]
    da = matmul_pallas(g, hw, trans_b=True)      # g (hw)^T      -> [N, N]
    atg = matmul_pallas(a, g, trans_a=True)      # a^T g         -> [N, C]
    dh = matmul_pallas(atg, w, trans_b=True)     # (a^T g) w^T   -> [N, F]
    dw = matmul_pallas(h, atg, trans_a=True)     # h^T (a^T g)   -> [F, C]
    return da, dh, dw


gcn_layer.defvjp(_gcn_layer_vjp_fwd, _gcn_layer_vjp_bwd)


# --------------------------------------------------------------------------- #
# Pallas kernel 3: tiled adjacency preparation (two passes).
#   modified_adj = clamp((P - diag(P)) + (P - diag(P))^T, -1, 1) + ori_adj
#   adj_norm     = D^-1/2 (modified_adj + I) D^-1/2
# --------------------------------------------------------------------------- #
def _adj_prep_pass1_kernel(p_ref, pt_ref, a_ref, mod_ref, deg_ref):
    i = pl.program_id(0)
    j = pl.program_id(1)
    tr, tc = mod_ref.shape
    row = i * tr + lax.broadcasted_iota(jnp.int32, (tr, tc), 0)
    col = j * tc + lax.broadcasted_iota(jnp.int32, (tr, tc), 1)
    diag = row == col
    p = jnp.where(diag, 0.0, p_ref[...])
    pt = jnp.where(diag, 0.0, pt_ref[...].T)        # (j,i) block of P, transposed
    mod = jnp.clip(p + pt, -1.0, 1.0) + a_ref[...]
    mod_ref[...] = mod

    @pl.when(j == 0)
    def _():
        deg_ref[...] = jnp.zeros_like(deg_ref)

    deg_ref[...] += jnp.sum(mod + jnp.where(diag, 1.0, 0.0), axis=1, keepdims=True)


def _adj_prep_pass2_kernel(mod_ref, degr_ref, degc_ref, norm_ref):
    i = pl.program_id(0)
    j = pl.program_id(1)
    tr, tc = norm_ref.shape
    row = i * tr + lax.broadcasted_iota(jnp.int32, (tr, tc), 0)
    col = j * tc + lax.broadcasted_iota(jnp.int32, (tr, tc), 1)
    ahat = mod_ref[...] + jnp.where(row == col, 1.0, 0.0)
    dr = degr_ref[...]                                   # (tr, 1)
    dc = degc_ref[...]                                   # (1, tc)
    dinv_r = jnp.where(dr > 0.0, lax.rsqrt(jnp.maximum(dr, 1e-12)), 0.0)
    dinv_c = jnp.where(dc > 0.0, lax.rsqrt(jnp.maximum(dc, 1e-12)), 0.0)
    norm_ref[...] = ahat * dinv_r * dinv_c


def adj_prep_pallas(adj_changes, ori_adj):
    n = adj_changes.shape[0]
    t, npad = _pick_block(n, _T_ELEM)
    p = _pad2d(adj_changes.astype(jnp.float32), (npad, npad))
    a = _pad2d(ori_adj.astype(jnp.float32), (npad, npad))
    grid = (npad // t, npad // t)
    mod, deg = pl.pallas_call(
        _adj_prep_pass1_kernel,
        out_shape=(jax.ShapeDtypeStruct((npad, npad), jnp.float32),
                   jax.ShapeDtypeStruct((npad, 1), jnp.float32)),
        grid_spec=pltpu.PrefetchScalarGridSpec(
            num_scalar_prefetch=0, grid=grid,
            in_specs=[pl.BlockSpec((t, t), lambda i, j: (i, j)),
                      pl.BlockSpec((t, t), lambda i, j: (j, i)),
                      pl.BlockSpec((t, t), lambda i, j: (i, j))],
            out_specs=[pl.BlockSpec((t, t), lambda i, j: (i, j)),
                       pl.BlockSpec((t, 1), lambda i, j: (i, 0))]),
        compiler_params=pltpu.CompilerParams(
            dimension_semantics=("parallel", "arbitrary")),
    )(p, p, a)
    deg_t = deg.reshape(1, npad)
    norm = pl.pallas_call(
        _adj_prep_pass2_kernel,
        out_shape=jax.ShapeDtypeStruct((npad, npad), jnp.float32),
        grid_spec=pltpu.PrefetchScalarGridSpec(
            num_scalar_prefetch=0, grid=grid,
            in_specs=[pl.BlockSpec((t, t), lambda i, j: (i, j)),
                      pl.BlockSpec((t, 1), lambda i, j: (i, 0)),
                      pl.BlockSpec((1, t), lambda i, j: (0, j))],
            out_specs=pl.BlockSpec((t, t), lambda i, j: (i, j))),
        compiler_params=pltpu.CompilerParams(
            dimension_semantics=("parallel", "parallel")),
    )(mod, deg, deg_t)
    if npad != n:
        mod = mod[:n, :n]
        norm = norm[:n, :n]
    return mod, norm


# --------------------------------------------------------------------------- #
# Pallas kernel 4: row-tiled log_softmax.
# --------------------------------------------------------------------------- #
def _log_softmax_kernel(x_ref, o_ref):
    x = x_ref[...]
    m = jnp.max(x, axis=-1, keepdims=True)
    s = x - m
    lse = jnp.log(jnp.sum(jnp.exp(s), axis=-1, keepdims=True))
    o_ref[...] = s - lse


def log_softmax_pallas(x, tile_rows=512):
    n, c = x.shape
    tr, npad = _pick_block(n, tile_rows)
    xp = _pad2d(x.astype(jnp.float32), (npad, c))
    out = pl.pallas_call(
        _log_softmax_kernel,
        out_shape=jax.ShapeDtypeStruct((npad, c), jnp.float32),
        grid_spec=pltpu.PrefetchScalarGridSpec(
            num_scalar_prefetch=0, grid=(npad // tr,),
            in_specs=[pl.BlockSpec((tr, c), lambda i: (i, 0))],
            out_specs=pl.BlockSpec((tr, c), lambda i: (i, 0))),
        compiler_params=pltpu.CompilerParams(dimension_semantics=("parallel",)),
    )(xp)
    return out[:n] if npad != n else out


# --------------------------------------------------------------------------- #
# Pallas kernel 5: tiled meta-gradient scoring (two passes).
#   score = grad_sum * (-2*A + 1);  score -= score.min();
#   score *= filter_potential_singletons(A)
# --------------------------------------------------------------------------- #
def _meta_pass1_kernel(g_ref, m_ref, min_ref, colsum_ref, *, n_valid, padded):
    jc = pl.program_id(0)
    ir = pl.program_id(1)
    tr, tc = g_ref.shape
    score = g_ref[...] * (-2.0 * m_ref[...] + 1.0)
    if padded:
        row = ir * tr + lax.broadcasted_iota(jnp.int32, (tr, tc), 0)
        col = jc * tc + lax.broadcasted_iota(jnp.int32, (tr, tc), 1)
        score = jnp.where((row < n_valid) & (col < n_valid), score, jnp.inf)

    @pl.when((jc == 0) & (ir == 0))
    def _():
        min_ref[...] = jnp.full(min_ref.shape, jnp.inf, min_ref.dtype)

    @pl.when(ir == 0)
    def _():
        colsum_ref[...] = jnp.zeros_like(colsum_ref)

    blk_min = jnp.min(jnp.min(score, axis=1, keepdims=True), axis=0, keepdims=True)
    min_ref[...] = jnp.minimum(min_ref[...], blk_min)
    colsum_ref[...] += jnp.sum(m_ref[...], axis=0, keepdims=True)


def _meta_pass2_kernel(g_ref, m_ref, mt_ref, min_ref, degc_ref, degr_ref, out_ref):
    adj = m_ref[...]
    score = g_ref[...] * (-2.0 * adj + 1.0) - min_ref[...]
    one_col = (degc_ref[...] == 1.0).astype(jnp.float32)      # (1, tc)
    one_row = (degr_ref[...] == 1.0).astype(jnp.float32)      # (tr, 1)
    l_and = one_col * adj                                     # resh * adj
    l_and_t = one_row * mt_ref[...].T                         # (resh * adj)^T
    mask = 1.0 - (l_and + l_and_t)
    out_ref[...] = score * mask


def meta_score_pallas(grad_sum, modified_adj):
    n = grad_sum.shape[0]
    t, npad = _pick_block(n, _T_ELEM)
    g = _pad2d(grad_sum.astype(jnp.float32), (npad, npad))
    m = _pad2d(modified_adj.astype(jnp.float32), (npad, npad))
    grid = (npad // t, npad // t)
    pass1 = functools.partial(_meta_pass1_kernel, n_valid=n, padded=(npad != n))
    minval, colsum = pl.pallas_call(
        pass1,
        out_shape=(jax.ShapeDtypeStruct((1, 1), jnp.float32),
                   jax.ShapeDtypeStruct((1, npad), jnp.float32)),
        grid_spec=pltpu.PrefetchScalarGridSpec(
            num_scalar_prefetch=0, grid=grid,
            in_specs=[pl.BlockSpec((t, t), lambda jc, ir: (ir, jc)),
                      pl.BlockSpec((t, t), lambda jc, ir: (ir, jc))],
            out_specs=[pl.BlockSpec((1, 1), lambda jc, ir: (0, 0)),
                       pl.BlockSpec((1, t), lambda jc, ir: (0, jc))]),
        compiler_params=pltpu.CompilerParams(
            dimension_semantics=("arbitrary", "arbitrary")),
    )(g, m)
    deg_rows = colsum.reshape(npad, 1)
    out = pl.pallas_call(
        _meta_pass2_kernel,
        out_shape=jax.ShapeDtypeStruct((npad, npad), jnp.float32),
        grid_spec=pltpu.PrefetchScalarGridSpec(
            num_scalar_prefetch=0, grid=grid,
            in_specs=[pl.BlockSpec((t, t), lambda i, j: (i, j)),
                      pl.BlockSpec((t, t), lambda i, j: (i, j)),
                      pl.BlockSpec((t, t), lambda i, j: (j, i)),
                      pl.BlockSpec((1, 1), lambda i, j: (0, 0)),
                      pl.BlockSpec((1, t), lambda i, j: (0, j)),
                      pl.BlockSpec((t, 1), lambda i, j: (i, 0))],
            out_specs=pl.BlockSpec((t, t), lambda i, j: (i, j))),
        compiler_params=pltpu.CompilerParams(
            dimension_semantics=("parallel", "parallel")),
    )(g, m, m, minval, colsum, deg_rows)
    return out[:n, :n] if npad != n else out


# --------------------------------------------------------------------------- #
# Plain-JAX glue.
# --------------------------------------------------------------------------- #
def _nll_loss(logprobs, labels, idx):
    lp = logprobs[idx]
    lb = labels[idx]
    return -jnp.mean(jnp.take_along_axis(lp, lb[:, None], axis=1))


def _normalize_from_changes(adj_changes, ori_adj):
    """Differentiable twin of adj_prep_pallas (identical dinv formulation)."""
    n = adj_changes.shape[0]
    p = adj_changes - jnp.diag(jnp.diag(adj_changes))
    mod = jnp.clip(p + p.T, -1.0, 1.0) + ori_adj
    ahat = mod + jnp.eye(n, dtype=mod.dtype)
    deg = ahat.sum(axis=1)
    dinv = jnp.where(deg > 0.0, lax.rsqrt(jnp.maximum(deg, 1e-12)), 0.0)
    return mod, ahat * dinv[:, None] * dinv[None, :]


def adam_step(params, grads, m, v, step, lr, b1=0.9, b2=0.999, eps=1e-8):
    step = jnp.asarray(step, jnp.float32)
    m = jax.tree_util.tree_map(lambda mi, g: b1 * mi + (1.0 - b1) * g, m, grads)
    v = jax.tree_util.tree_map(lambda vi, g: b2 * vi + (1.0 - b2) * (g * g), v, grads)
    bc1 = 1.0 - b1 ** step
    bc2 = 1.0 - b2 ** step
    params = jax.tree_util.tree_map(
        lambda p, mi, vi: p - lr * (mi / bc1) / (jnp.sqrt(vi / bc2) + eps),
        params, m, v)
    return params, m, v


class MetaApproxPallas:
    """JAX/Pallas re-implementation of MetaApprox.forward."""

    def __init__(self, nfeat, hidden_sizes, nclass, nnodes, dropout, train_iters,
                 attack_features, lambda_, lr=0.01, with_relu=False,
                 with_bias=False, seed=0):
        self.nfeat = nfeat
        self.hidden_sizes = hidden_sizes
        self.nclass = nclass
        self.nnodes = nnodes
        self.dropout = dropout          # unused on the with_relu=False path
        self.train_iters = train_iters
        self.attack_features = attack_features
        self.lambda_ = float(lambda_)
        self.lr = lr
        self.with_relu = with_relu
        self.with_bias = with_bias
        self._key = jax.random.PRNGKey(seed)

        dims = []
        prev = nfeat
        for nhid in hidden_sizes:
            dims.append((prev, nhid))
            prev = nhid
        dims.append((prev, nclass))
        self.layer_dims = tuple(dims)

        self.adj_changes = jnp.zeros((nnodes, nnodes), jnp.float32)
        self.weights, self.biases = self._init_params(self._next_key())
        # Single jitted perturbation step (adj prep + inner_train + meta score +
        # argmax update): no Python-level re-dispatch of pallas_calls per iteration.
        self._perturb_step = jax.jit(self._build_perturb_step())

    # ---- parameter init: uniform(-stdv, stdv), stdv = 1/sqrt(fan_out) ----
    def _next_key(self):
        self._key, k = jax.random.split(self._key)
        return k

    def _init_params(self, key):
        keys = jax.random.split(key, 2 * len(self.layer_dims))
        ws, bs = [], []
        for li, (din, dout) in enumerate(self.layer_dims):
            stdv = 1.0 / math.sqrt(dout)
            ws.append(jax.random.uniform(keys[2 * li], (din, dout),
                                         jnp.float32, -stdv, stdv))
            bs.append(jax.random.uniform(keys[2 * li + 1], (dout,),
                                         jnp.float32, -stdv, stdv))
        return ws, bs

    # ---- GCN forward: every layer is one fused Pallas (A@H)@W call ----
    def _gcn_forward(self, adj_norm, features, ws, bs):
        hidden = features
        for w, b in zip(ws, bs):
            hidden = gcn_layer(adj_norm, hidden, w)
            if self.with_bias:
                hidden = hidden + b
            if self.with_relu:
                hidden = jax.nn.relu(hidden)
        return hidden

    # ---- build the jitted per-perturbation step ----
    def _build_perturb_step(self):
        lambda_ = self.lambda_
        train_iters = self.train_iters
        lr = self.lr
        nnodes = self.nnodes
        init_params = self._init_params
        gcn_forward = self._gcn_forward

        def losses(adj_ch, params, features, ori_adj, labels, labels_st,
                   idx_train, idx_unlabeled):
            ws, bs = params
            _, adj_norm = _normalize_from_changes(adj_ch, ori_adj)
            hidden = gcn_forward(adj_norm, features, ws, bs)
            logp = jax.nn.log_softmax(hidden, axis=1)
            return (_nll_loss(logp, labels, idx_train),
                    _nll_loss(logp, labels_st, idx_unlabeled))

        def step(adj_changes, ori_adj, features, labels, labels_st,
                 idx_train, idx_unlabeled, key):
            modified_adj, _ = adj_prep_pallas(adj_changes, ori_adj)
            params = init_params(key)
            m0 = jax.tree_util.tree_map(jnp.zeros_like, params)
            v0 = jax.tree_util.tree_map(jnp.zeros_like, params)
            grad_sum0 = jnp.zeros_like(adj_changes)
            one = jnp.ones((), jnp.float32)
            zero = jnp.zeros((), jnp.float32)

            def inner_body(j, carry):
                params, m, v, grad_sum = carry
                # One forward, two pullbacks (stand-in for torch.autograd):
                #   d(loss_labeled)/d(weights) for the Adam step,
                #   d(attack_loss)/d(adj_changes) for grad_sum.
                _, pullback = jax.vjp(
                    lambda ac, p: losses(ac, p, features, ori_adj, labels,
                                         labels_st, idx_train, idx_unlabeled),
                    adj_changes, params)
                d_adj_lab, grads_lab = pullback((one, zero))
                if lambda_ == 1.0:
                    d_adj_att = d_adj_lab
                elif lambda_ == 0.0:
                    d_adj_att, _ = pullback((zero, one))
                else:
                    d_adj_att, _ = pullback((lambda_ * one, (1.0 - lambda_) * one))
                grad_sum = grad_sum + d_adj_att
                params, m, v = adam_step(params, grads_lab, m, v, j + 1, lr)
                return params, m, v, grad_sum

            _, _, _, grad_sum = lax.fori_loop(
                0, train_iters, inner_body, (params, m0, v0, grad_sum0))

            adj_meta_grad = meta_score_pallas(grad_sum, modified_adj)
            flat = jnp.argmax(adj_meta_grad)
            row = flat // nnodes
            col = flat % nnodes
            delta = -2.0 * modified_adj[row, col] + 1.0
            adj_changes = adj_changes.at[row, col].add(delta)
            adj_changes = adj_changes.at[col, row].add(delta)
            return adj_changes

        return step

    # ---- surrogate self-training labels ----
    def train_surrogate(self, features, adj, labels, idx_train):
        # TODO(synk): the HITSGNN_ADAPTIVE surrogate and its 200-iteration Adam
        # training loop are not available; the self-training labels are emulated
        # with the freshly-initialized Pallas GCN forward on the clean graph.
        _, adj_norm = adj_prep_pallas(jnp.zeros_like(adj), adj)
        hidden = self._gcn_forward(adj_norm, features, self.weights, self.biases)
        output = log_softmax_pallas(hidden)
        labels_st = jnp.argmax(output, axis=1)
        labels_st = labels_st.at[idx_train].set(labels[idx_train])
        return labels_st

    # ---- the module's forward ----
    def forward(self, features, ori_adj, labels, idx_train, idx_unlabeled,
                perturbations, ll_constraint=True, ll_cutoff=0.004):
        features = jnp.asarray(features, jnp.float32)
        ori_adj = jnp.asarray(ori_adj, jnp.float32)
        labels = jnp.asarray(labels, jnp.int32)
        idx_train = jnp.asarray(idx_train, jnp.int32)
        idx_unlabeled = jnp.asarray(idx_unlabeled, jnp.int32)

        labels_self_training = self.train_surrogate(features, ori_adj, labels,
                                                    idx_train)
        if ll_constraint:
            # TODO(synk): utils.likelihood_ratio_filter (power-law log-likelihood
            # constraint) has no clean Pallas equivalent; the mask is not applied.
            pass

        for _ in range(perturbations):
            self.adj_changes = self._perturb_step(
                self.adj_changes, ori_adj, features, labels, labels_self_training,
                idx_train, idx_unlabeled, self._next_key())
            if self.attack_features:
                pass  # matches the reference (no-op)

        return self.adj_changes + ori_adj


# --------------------------------------------------------------------------- #
# main
# --------------------------------------------------------------------------- #
if __name__ == "__main__":
    key = jax.random.PRNGKey(0)
    N, F, H, C = 128, 32, 32, 8   # nnodes, nfeat, hidden, nclass

    k1, k2, k3 = jax.random.split(key, 3)
    features = jax.random.normal(k1, (N, F), jnp.float32)
    upper = jnp.triu((jax.random.uniform(k2, (N, N)) < 0.05).astype(jnp.float32), 1)
    ori_adj = upper + upper.T                      # symmetric 0/1, zero diagonal
    labels = jax.random.randint(k3, (N,), 0, C)
    idx_train = jnp.arange(0, 32)
    idx_unlabeled = jnp.arange(32, N)

    model = MetaApproxPallas(
        nfeat=F, hidden_sizes=[H], nclass=C, nnodes=N, dropout=0.5,
        train_iters=3, attack_features=False, lambda_=0.5, lr=0.01,
        with_relu=False, with_bias=False, seed=0)

    out = model.forward(features, ori_adj, labels, idx_train, idx_unlabeled,
                        perturbations=2, ll_constraint=False)
    jax.block_until_ready(out)
    print("KERNEL_OK")
</pallas_src>

<mosaic_0001>
module attributes {stable_mosaic.version = 11 : i64} {
  func.func @_adj_prep_pass1_kernel(%arg0: i32, %arg1: i32, %arg2: memref<128x128xf32, #tpu.memory_space<vmem>>, %arg3: memref<128x128xf32, #tpu.memory_space<vmem>>, %arg4: memref<128x128xf32, #tpu.memory_space<vmem>>, %arg5: memref<128x128xf32, #tpu.memory_space<vmem>>, %arg6: memref<128x1xf32, #tpu.memory_space<vmem>>) attributes {dimension_semantics = [#tpu.dimension_semantics<parallel>, #tpu.dimension_semantics<arbitrary>], iteration_bounds = array<i64: 1, 1>, scalar_prefetch = 0 : i64, scratch_operands = 0 : i64, tpu.core_type = #tpu.core_type<tc>, window_params = [{transform_indices = @transform_0, window_bounds = array<i64: 128, 128>}, {transform_indices = @transform_1, window_bounds = array<i64: 128, 128>}, {transform_indices = @transform_2, window_bounds = array<i64: 128, 128>}, {transform_indices = @transform_3, window_bounds = array<i64: 128, 128>}, {transform_indices = @transform_4, window_bounds = array<i64: 128, 1>}]} {
    %c128_i32 = arith.constant 128 : i32
    %0 = arith.muli %arg0, %c128_i32 : i32
    %1 = tpu.iota {dimensions = array<i32: 0>} : vector<128x128xi32>
    %2 = vector.broadcast %0 : i32 to vector<128x128xi32>
    %3 = arith.addi %2, %1 : vector<128x128xi32>
    %c128_i32_0 = arith.constant 128 : i32
    %4 = arith.muli %arg1, %c128_i32_0 : i32
    %5 = tpu.iota {dimensions = array<i32: 1>} : vector<128x128xi32>
    %6 = vector.broadcast %4 : i32 to vector<128x128xi32>
    %7 = arith.addi %6, %5 : vector<128x128xi32>
    %8 = arith.cmpi eq, %3, %7 : vector<128x128xi32>
    %c0 = arith.constant 0 : index
    %c0_1 = arith.constant 0 : index
    %9 = vector.load %arg2[%c0, %c0_1] : memref<128x128xf32, #tpu.memory_space<vmem>>, vector<128x128xf32>
    %cst = arith.constant 0.000000e+00 : f32
    %10 = vector.broadcast %cst : f32 to vector<128x128xf32>
    %11 = arith.select %8, %10, %9 : vector<128x128xi1>, vector<128x128xf32>
    %c0_2 = arith.constant 0 : index
    %c0_3 = arith.constant 0 : index
    %12 = vector.load %arg3[%c0_2, %c0_3] : memref<128x128xf32, #tpu.memory_space<vmem>>, vector<128x128xf32>
    %13 = tpu.transpose %12, [1, 0] : vector<128x128xf32> -> vector<128x128xf32>
    %cst_4 = arith.constant 0.000000e+00 : f32
    %14 = vector.broadcast %cst_4 : f32 to vector<128x128xf32>
    %15 = arith.select %8, %14, %13 : vector<128x128xi1>, vector<128x128xf32>
    %16 = arith.addf %11, %15 : vector<128x128xf32>
    %cst_5 = arith.constant -1.000000e+00 : f32
    %cst_6 = arith.constant 1.000000e+00 : f32
    %17 = vector.broadcast %cst_5 : f32 to vector<128x128xf32>
    %18 = arith.maximumf %17, %16 : vector<128x128xf32>
    %19 = vector.broadcast %cst_6 : f32 to vector<128x128xf32>
    %20 = arith.minimumf %19, %18 : vector<128x128xf32>
    %c0_7 = arith.constant 0 : index
    %c0_8 = arith.constant 0 : index
    %21 = vector.load %arg4[%c0_7, %c0_8] : memref<128x128xf32, #tpu.memory_space<vmem>>, vector<128x128xf32>
    %22 = arith.addf %20, %21 : vector<128x128xf32>
    %c0_9 = arith.constant 0 : index
    %c0_10 = arith.constant 0 : index
    %23 = vector.load %arg5[%c0_9, %c0_10] : memref<128x128xf32, #tpu.memory_space<vmem>>, vector<128x128xf32>
    tpu.vector_store %arg5[%c0_9, %c0_10], %22 {strides = array<i32>} : memref<128x128xf32, #tpu.memory_space<vmem>>, vector<128x128xf32>,
    %c0_i32 = arith.constant 0 : i32
    %24 = arith.cmpi eq, %arg1, %c0_i32 : i32
    %25 = arith.extui %24 : i1 to i32
    %c0_i32_11 = arith.constant 0 : i32
    %26 = arith.cmpi ne, %25, %c0_i32_11 : i32
    scf.if %26 {
      %cst_19 = arith.constant 0.000000e+00 : f32
      %36 = vector.broadcast %cst_19 : f32 to vector<128x1xf32>
      %c0_20 = arith.constant 0 : index
      %c0_21 = arith.constant 0 : index
      %37 = vector.load %arg6[%c0_20, %c0_21] : memref<128x1xf32, #tpu.memory_space<vmem>>, vector<128x1xf32>
      tpu.vector_store %arg6[%c0_20, %c0_21], %36 {strides = array<i32>} : memref<128x1xf32, #tpu.memory_space<vmem>>, vector<128x1xf32>,
    } else {
    }
    %c0_12 = arith.constant 0 : index
    %c0_13 = arith.constant 0 : index
    %27 = vector.load %arg6[%c0_12, %c0_13] : memref<128x1xf32, #tpu.memory_space<vmem>>, vector<128x1xf32>
    %cst_14 = arith.constant 1.000000e+00 : f32
    %cst_15 = arith.constant 0.000000e+00 : f32
    %28 = vector.broadcast %cst_14 : f32 to vector<128x128xf32>
    %29 = vector.broadcast %cst_15 : f32 to vector<128x128xf32>
    %30 = arith.select %8, %28, %29 : vector<128x128xi1>, vector<128x128xf32>
    %31 = arith.addf %22, %30 : vector<128x128xf32>
    %cst_16 = arith.constant dense<0.000000e+00> : vector<128xf32>
    %32 = vector.multi_reduction <add>, %31, %cst_16 [1] : vector<128x128xf32> to vector<128xf32>
    %33 = vector.shape_cast %32 : vector<128xf32> to vector<128x1xf32>
    %34 = arith.addf %27, %33 : vector<128x1xf32>
    %c0_17 = arith.constant 0 : index
    %c0_18 = arith.constant 0 : index
    %35 = vector.load %arg6[%c0_17, %c0_18] : memref<128x1xf32, #tpu.memory_space<vmem>>, vector<128x1xf32>
    tpu.vector_store %arg6[%c0_17, %c0_18], %34 {strides = array<i32>} : memref<128x1xf32, #tpu.memory_space<vmem>>, vector<128x1xf32>,
    return
  }
  func.func @transform_0(%arg0: i32, %arg1: i32) -> (i32, i32) {
    %c0_i32 = arith.constant 0 : i32
    return %arg0, %arg1 : i32, i32
  }
  func.func @transform_1(%arg0: i32, %arg1: i32) -> (i32, i32) {
    %c0_i32 = arith.constant 0 : i32
    return %arg1, %arg0 : i32, i32
  }
  func.func @transform_2(%arg0: i32, %arg1: i32) -> (i32, i32) {
    %c0_i32 = arith.constant 0 : i32
    return %arg0, %arg1 : i32, i32
  }
  func.func @transform_3(%arg0: i32, %arg1: i32) -> (i32, i32) {
    %c0_i32 = arith.constant 0 : i32
    return %arg0, %arg1 : i32, i32
  }
  func.func @transform_4(%arg0: i32, %arg1: i32) -> (i32, i32) {
    %c0_i32 = arith.constant 0 : i32
    %c0_i32_0 = arith.constant 0 : i32
    return %arg0, %c0_i32 : i32, i32
  }
}

</mosaic_0001>

<llo_original>
// kernel: tpu_custom_call.1
$region0: #{tpu_custom_call.1}
  #allocation0 [shape = 'u32[]', space=smem, size = 0x4, offset = 0x4, fixed_abs, tag = 'smem constant byte address 0x4 - core index']
  #allocation1 [shape = 'u32[144,128]{1,0:T(1,128)}', space=vmem, size = 0x12000, scoped, tag = 'internal scratch']
  %s0 = inlined_call_operand.hbm [shape: f32[128,128], index: 0, kind: input, shape index: {}]
  %s1 = inlined_call_operand.hbm [shape: f32[128,128], index: 1, kind: input, shape index: {}]
  %s2 = inlined_call_operand.hbm [shape: f32[128,128], index: 2, kind: input, shape index: {}]
  %s3 = inlined_call_operand.hbm [shape: f32[128,128], index: 3, kind: output, shape index: {0}]
  %s4 = inlined_call_operand.vmem [shape: f32[128,1], index: 4, kind: output, shape index: {1}]
  %5 = xla_tuple %s3, %s4
  %s6 = sld [smem:[#allocation0]]
  $region46: #{tpu_custom_call.1} parent=0
    _
  %s8 = ssub.s32 1, %s6
  %s9 = scalar_select 0, %s8, %s6
  $region1: #{tpu_custom_call.1} parent=0
    #allocation2 [shape = 'u8[65536]{0}', space=vmem, size = 0x10000, scoped, tag = 'input window, operand 0, single buffered']
    #allocation3 [shape = 's32[1]{0}', space=sflag, size = 0x4, scoped, tag = 'scoped memory for tpu_custom_call.1']
    #allocation4 [shape = 's32[1]{0}', space=sflag, size = 0x4, scoped, tag = 'scoped memory for tpu_custom_call.1']
    #allocation5 [shape = 'u8[65536]{0}', space=vmem, size = 0x10000, scoped, tag = 'input window, operand 1, single buffered']
    #allocation6 [shape = 's32[1]{0}', space=sflag, size = 0x4, scoped, tag = 'scoped memory for tpu_custom_call.1']
    #allocation7 [shape = 'u8[65536]{0}', space=vmem, size = 0x10000, scoped, tag = 'input window, operand 2, single buffered']
    #allocation8 [shape = 'u8[65536]{0}', space=vmem, size = 0x10000, scoped, tag = 'output window, operand 0, single buffered']
    %10 = vsyncpa [#allocation3], 0
    %11 = vsyncpa [#allocation6], 0
    %12 = vsyncpa [#allocation4], 0
    // Predicated region
    $region2: #{tpu_custom_call.1} parent=1 // pred_check
      _
    $region3: #{tpu_custom_call.1} parent=1 // pred_check_branch
      %14 = sbr.rel (0) target = $region5
    $region4: #{tpu_custom_call.1} parent=1 // pred_region
      %s16 = ssub.s32 2048, 2048
      %17 = vsyncadd [#allocation3], %s16
      %s18 = sshll.u32 [#allocation2], 4
      %s19 = int_to_ptr.vmem [resolvable:$true] %s18
      %24 = dma.hbm_to_vmem [thread:$0]  %s0, 2048, %s19, [#allocation3], 128, 128, 8
    $region5: #{tpu_custom_call.1} parent=1 // pred_fallthru
      _
    // Predicated region
    $region6: #{tpu_custom_call.1} parent=1 // pred_check
      _
    $region7: #{tpu_custom_call.1} parent=1 // pred_check_branch
      %26 = sbr.rel (0) target = $region9
    $region8: #{tpu_custom_call.1} parent=1 // pred_region
      %s28 = ssub.s32 2048, 2048
      %29 = vsyncadd [#allocation6], %s28
      %s30 = sshll.u32 [#allocation5], 4
      %s31 = int_to_ptr.vmem [resolvable:$true] %s30
      %36 = dma.hbm_to_vmem [thread:$0]  %s1, 2048, %s31, [#allocation6], 128, 128, 8
    $region9: #{tpu_custom_call.1} parent=1 // pred_fallthru
      _
    // Predicated region
    $region10: #{tpu_custom_call.1} parent=1 // pred_check
      _
    $region11: #{tpu_custom_call.1} parent=1 // pred_check_branch
      %38 = sbr.rel (0) target = $region13
    $region12: #{tpu_custom_call.1} parent=1 // pred_region
      %s40 = ssub.s32 2048, 2048
      %41 = vsyncadd [#allocation6], %s40
      %s42 = sshll.u32 [#allocation7], 4
      %s43 = int_to_ptr.vmem [resolvable:$true] %s42
      %48 = dma.hbm_to_vmem [thread:$0]  %s2, 2048, %s43, [#allocation6], 128, 128, 8
    $region13: #{tpu_custom_call.1} parent=1 // pred_fallthru
      _
    // Predicated region
    $region14: #{tpu_custom_call.1} parent=1 // pred_check
      _
    $region15: #{tpu_custom_call.1} parent=1 // pred_check_branch
      %50 = sbr.rel (0) target = $region17
    $region16: #{tpu_custom_call.1} parent=1 // pred_region
      %51 = dma.done [#allocation3], 2048
    $region17: #{tpu_custom_call.1} parent=1 // pred_fallthru
      _
    // Predicated region
    $region18: #{tpu_custom_call.1} parent=1 // pred_check
      _
    $region19: #{tpu_custom_call.1} parent=1 // pred_check_branch
      %53 = sbr.rel (0) target = $region21
    $region20: #{tpu_custom_call.1} parent=1 // pred_region
      %54 = dma.done [#allocation6], 2048
    $region21: #{tpu_custom_call.1} parent=1 // pred_fallthru
      _
    // Predicated region
    $region22: #{tpu_custom_call.1} parent=1 // pred_check
      _
    $region23: #{tpu_custom_call.1} parent=1 // pred_check_branch
      %56 = sbr.rel (0) target = $region25
    $region24: #{tpu_custom_call.1} parent=1 // pred_region
      %57 = dma.done [#allocation6], 2048
    $region25: #{tpu_custom_call.1} parent=1 // pred_fallthru
      _
    %s58 = smul.u32 0, 128
    %v59 = vlaneseq
    %v60 = vshrl.u32 %v59, 7
    %v61 = vadd.s32 %v60, 8
    %v62 = vadd.s32 %v60, 16
    %v63 = vadd.s32 %v60, 24
    %v64 = vadd.s32 %v60, 32
    %v65 = vadd.s32 %v60, 40
    %v66 = vadd.s32 %v60, 48
    %v67 = vadd.s32 %v60, 56
    %v68 = vadd.s32 %v60, 64
    %v69 = vadd.s32 %v60, 72
    %v70 = vadd.s32 %v60, 80
    %v71 = vadd.s32 %v60, 88
    %v72 = vadd.s32 %v60, 96
    %v73 = vadd.s32 %v60, 104
    %v74 = vadd.s32 %v60, 112
    %v75 = vadd.s32 %v60, 120
    %v76 = vstv %s58
    %v77 = vadd.s32 %v76, %v60
    %v78 = vadd.s32 %v76, %v61
    %v79 = vadd.s32 %v76, %v62
    %v80 = vadd.s32 %v76, %v63
    %v81 = vadd.s32 %v76, %v64
    %v82 = vadd.s32 %v76, %v65
    %v83 = vadd.s32 %v76, %v66
    %v84 = vadd.s32 %v76, %v67
    %v85 = vadd.s32 %v76, %v68
    %v86 = vadd.s32 %v76, %v69
    %v87 = vadd.s32 %v76, %v70
    %v88 = vadd.s32 %v76, %v71
    %v89 = vadd.s32 %v76, %v72
    %v90 = vadd.s32 %v76, %v73
    %v91 = vadd.s32 %v76, %v74
    %v92 = vadd.s32 %v76, %v75
    %s93 = smul.u32 0, 128
    %v94 = vlaneseq
    %v95 = vand.u32 %v94, 127
    %v96 = vstv %s93
    %v97 = vadd.s32 %v96, %v95
    %vm98 = vcmp.eq.s32.totalorder %v77, %v97
    %vm99 = vcmp.eq.s32.totalorder %v78, %v97
    %vm100 = vcmp.eq.s32.totalorder %v79, %v97
    %vm101 = vcmp.eq.s32.totalorder %v80, %v97
    %vm102 = vcmp.eq.s32.totalorder %v81, %v97
    %vm103 = vcmp.eq.s32.totalorder %v82, %v97
    %vm104 = vcmp.eq.s32.totalorder %v83, %v97
    %vm105 = vcmp.eq.s32.totalorder %v84, %v97
    %vm106 = vcmp.eq.s32.totalorder %v85, %v97
    %vm107 = vcmp.eq.s32.totalorder %v86, %v97
    %vm108 = vcmp.eq.s32.totalorder %v87, %v97
    %vm109 = vcmp.eq.s32.totalorder %v88, %v97
    %vm110 = vcmp.eq.s32.totalorder %v89, %v97
    %vm111 = vcmp.eq.s32.totalorder %v90, %v97
    %vm112 = vcmp.eq.s32.totalorder %v91, %v97
    %vm113 = vcmp.eq.s32.totalorder %v92, %v97
    %v114 = vld [vmem:[#allocation2] sm:$0xff]
    %v115 = vld [vmem:[#allocation2 + $0x8] sm:$0xff]
    %v116 = vld [vmem:[#allocation2 + $0x10] sm:$0xff]
    %v117 = vld [vmem:[#allocation2 + $0x18] sm:$0xff]
    %v118 = vld [vmem:[#allocation2 + $0x20] sm:$0xff]
    %v119 = vld [vmem:[#allocation2 + $0x28] sm:$0xff]
    %v120 = vld [vmem:[#allocation2 + $0x30] sm:$0xff]
    %v121 = vld [vmem:[#allocation2 + $0x38] sm:$0xff]
    %v122 = vld [vmem:[#allocation2 + $0x40] sm:$0xff]
    %v123 = vld [vmem:[#allocation2 + $0x48] sm:$0xff]
    %v124 = vld [vmem:[#allocation2 + $0x50] sm:$0xff]
    %v125 = vld [vmem:[#allocation2 + $0x58] sm:$0xff]
    %v126 = vld [vmem:[#allocation2 + $0x60] sm:$0xff]
    %v127 = vld [vmem:[#allocation2 + $0x68] sm:$0xff]
    %v128 = vld [vmem:[#allocation2 + $0x70] sm:$0xff]
    %v129 = vld [vmem:[#allocation2 + $0x78] sm:$0xff]
    %v130 = vsel %vm98, 0.0, %v114
    %v131 = vsel %vm99, 0.0, %v115
    %v132 = vsel %vm100, 0.0, %v116
    %v133 = vsel %vm101, 0.0, %v117
    %v134 = vsel %vm102, 0.0, %v118
    %v135 = vsel %vm103, 0.0, %v119
    %v136 = vsel %vm104, 0.0, %v120
    %v137 = vsel %vm105, 0.0, %v121
    %v138 = vsel %vm106, 0.0, %v122
    %v139 = vsel %vm107, 0.0, %v123
    %v140 = vsel %vm108, 0.0, %v124
    %v141 = vsel %vm109, 0.0, %v125
    %v142 = vsel %vm110, 0.0, %v126
    %v143 = vsel %vm111, 0.0, %v127
    %v144 = vsel %vm112, 0.0, %v128
    %v145 = vsel %vm113, 0.0, %v129
    %v146 = vld [vmem:[#allocation5] sm:$0xff]
    %v147 = vld [vmem:[#allocation5 + $0x8] sm:$0xff]
    %v148 = vld [vmem:[#allocation5 + $0x10] sm:$0xff]
    %v149 = vld [vmem:[#allocation5 + $0x18] sm:$0xff]
    %v150 = vld [vmem:[#allocation5 + $0x20] sm:$0xff]
    %v151 = vld [vmem:[#allocation5 + $0x28] sm:$0xff]
    %v152 = vld [vmem:[#allocation5 + $0x30] sm:$0xff]
    %v153 = vld [vmem:[#allocation5 + $0x38] sm:$0xff]
    %v154 = vld [vmem:[#allocation5 + $0x40] sm:$0xff]
    %v155 = vld [vmem:[#allocation5 + $0x48] sm:$0xff]
    %v156 = vld [vmem:[#allocation5 + $0x50] sm:$0xff]
    %v157 = vld [vmem:[#allocation5 + $0x58] sm:$0xff]
    %v158 = vld [vmem:[#allocation5 + $0x60] sm:$0xff]
    %v159 = vld [vmem:[#allocation5 + $0x68] sm:$0xff]
    %v160 = vld [vmem:[#allocation5 + $0x70] sm:$0xff]
    %v161 = vld [vmem:[#allocation5 + $0x78] sm:$0xff]
    %162 = vxpose.xlu0.b32.start [1/16] %v146, 128
    %163 = vxpose.xlu0.b32.cont [2/16] %v147, 128
    %164 = vxpose.xlu0.b32.cont [3/16] %v148, 128
    %165 = vxpose.xlu0.b32.cont [4/16] %v149, 128
    %166 = vxpose.xlu0.b32.cont [5/16] %v150, 128
    %167 = vxpose.xlu0.b32.cont [6/16] %v151, 128
    %168 = vxpose.xlu0.b32.cont [7/16] %v152, 128
    %169 = vxpose.xlu0.b32.cont [8/16] %v153, 128
    %170 = vxpose.xlu0.b32.cont [9/16] %v154, 128
    %171 = vxpose.xlu0.b32.cont [10/16] %v155, 128
    %172 = vxpose.xlu0.b32.cont [11/16] %v156, 128
    %173 = vxpose.xlu0.b32.cont [12/16] %v157, 128
    %174 = vxpose.xlu0.b32.cont [13/16] %v158, 128
    %175 = vxpose.xlu0.b32.cont [14/16] %v159, 128
    %176 = vxpose.xlu0.b32.cont [15/16] %v160, 128
    %177 = vxpose.xlu0.b32.end [16/16] %v161, 128
    %v178 = vpop.trf.xlu0
    %v179 = vpop.trf.xlu0
    %v180 = vpop.trf.xlu0
    %v181 = vpop.trf.xlu0
    %v182 = vpop.trf.xlu0
    %v183 = vpop.trf.xlu0
    %v184 = vpop.trf.xlu0
    %v185 = vpop.trf.xlu0
    %v186 = vpop.trf.xlu0
    %v187 = vpop.trf.xlu0
    %v188 = vpop.trf.xlu0
    %v189 = vpop.trf.xlu0
    %v190 = vpop.trf.xlu0
    %v191 = vpop.trf.xlu0
    %v192 = vpop.trf.xlu0
    %v193 = vpop.trf.xlu0
    %v194 = vsel %vm98, 0.0, %v178
    %v195 = vsel %vm99, 0.0, %v179
    %v196 = vsel %vm100, 0.0, %v180
    %v197 = vsel %vm101, 0.0, %v181
    %v198 = vsel %vm102, 0.0, %v182
    %v199 = vsel %vm103, 0.0, %v183
    %v200 = vsel %vm104, 0.0, %v184
    %v201 = vsel %vm105, 0.0, %v185
    %v202 = vsel %vm106, 0.0, %v186
    %v203 = vsel %vm107, 0.0, %v187
    %v204 = vsel %vm108, 0.0, %v188
    %v205 = vsel %vm109, 0.0, %v189
    %v206 = vsel %vm110, 0.0, %v190
    %v207 = vsel %vm111, 0.0, %v191
    %v208 = vsel %vm112, 0.0, %v192
    %v209 = vsel %vm113, 0.0, %v193
    %v210 = vadd.f32 %v130, %v194
    %v211 = vadd.f32 %v131, %v195
    %v212 = vadd.f32 %v132, %v196
    %v213 = vadd.f32 %v133, %v197
    %v214 = vadd.f32 %v134, %v198
    %v215 = vadd.f32 %v135, %v199
    %v216 = vadd.f32 %v136, %v200
    %v217 = vadd.f32 %v137, %v201
    %v218 = vadd.f32 %v138, %v202
    %v219 = vadd.f32 %v139, %v203
    %v220 = vadd.f32 %v140, %v204
    %v221 = vadd.f32 %v141, %v205
    %v222 = vadd.f32 %v142, %v206
    %v223 = vadd.f32 %v143, %v207
    %v224 = vadd.f32 %v144, %v208
    %v225 = vadd.f32 %v145, %v209
    %v226 = vmax.f32 %v210, -1.0
    %v227 = vmax.f32 %v211, -1.0
    %v228 = vmax.f32 %v212, -1.0
    %v229 = vmax.f32 %v213, -1.0
    %v230 = vmax.f32 %v214, -1.0
    %v231 = vmax.f32 %v215, -1.0
    %v232 = vmax.f32 %v216, -1.0
    %v233 = vmax.f32 %v217, -1.0
    %v234 = vmax.f32 %v218, -1.0
    %v235 = vmax.f32 %v219, -1.0
    %v236 = vmax.f32 %v220, -1.0
    %v237 = vmax.f32 %v221, -1.0
    %v238 = vmax.f32 %v222, -1.0
    %v239 = vmax.f32 %v223, -1.0
    %v240 = vmax.f32 %v224, -1.0
    %v241 = vmax.f32 %v225, -1.0
    %v242 = vmin.f32 %v226, 1.0
    %v243 = vmin.f32 %v227, 1.0
    %v244 = vmin.f32 %v228, 1.0
    %v245 = vmin.f32 %v229, 1.0
    %v246 = vmin.f32 %v230, 1.0
    %v247 = vmin.f32 %v231, 1.0
    %v248 = vmin.f32 %v232, 1.0
    %v249 = vmin.f32 %v233, 1.0
    %v250 = vmin.f32 %v234, 1.0
    %v251 = vmin.f32 %v235, 1.0
    %v252 = vmin.f32 %v236, 1.0
    %v253 = vmin.f32 %v237, 1.0
    %v254 = vmin.f32 %v238, 1.0
    %v255 = vmin.f32 %v239, 1.0
    %v256 = vmin.f32 %v240, 1.0
    %v257 = vmin.f32 %v241, 1.0
    %v258 = vld [vmem:[#allocation7] sm:$0xff]
    %v259 = vld [vmem:[#allocation7 + $0x8] sm:$0xff]
    %v260 = vld [vmem:[#allocation7 + $0x10] sm:$0xff]
    %v261 = vld [vmem:[#allocation7 + $0x18] sm:$0xff]
    %v262 = vld [vmem:[#allocation7 + $0x20] sm:$0xff]
    %v263 = vld [vmem:[#allocation7 + $0x28] sm:$0xff]
    %v264 = vld [vmem:[#allocation7 + $0x30] sm:$0xff]
    %v265 = vld [vmem:[#allocation7 + $0x38] sm:$0xff]
    %v266 = vld [vmem:[#allocation7 + $0x40] sm:$0xff]
    %v267 = vld [vmem:[#allocation7 + $0x48] sm:$0xff]
    %v268 = vld [vmem:[#allocation7 + $0x50] sm:$0xff]
    %v269 = vld [vmem:[#allocation7 + $0x58] sm:$0xff]
    %v270 = vld [vmem:[#allocation7 + $0x60] sm:$0xff]
    %v271 = vld [vmem:[#allocation7 + $0x68] sm:$0xff]
    %v272 = vld [vmem:[#allocation7 + $0x70] sm:$0xff]
    %v273 = vld [vmem:[#allocation7 + $0x78] sm:$0xff]
    %v274 = vadd.f32 %v242, %v258
    %v275 = vadd.f32 %v243, %v259
    %v276 = vadd.f32 %v244, %v260
    %v277 = vadd.f32 %v245, %v261
    %v278 = vadd.f32 %v246, %v262
    %v279 = vadd.f32 %v247, %v263
    %v280 = vadd.f32 %v248, %v264
    %v281 = vadd.f32 %v249, %v265
    %v282 = vadd.f32 %v250, %v266
    %v283 = vadd.f32 %v251, %v267
    %v284 = vadd.f32 %v252, %v268
    %v285 = vadd.f32 %v253, %v269
    %v286 = vadd.f32 %v254, %v270
    %v287 = vadd.f32 %v255, %v271
    %v288 = vadd.f32 %v256, %v272
    %v289 = vadd.f32 %v257, %v273
    %290 = vst [vmem:[#allocation8] sm:$0xff] %v274
    %291 = vst [vmem:[#allocation8 + $0x8] sm:$0xff] %v275
    %292 = vst [vmem:[#allocation8 + $0x10] sm:$0xff] %v276
    %293 = vst [vmem:[#allocation8 + $0x18] sm:$0xff] %v277
    %294 = vst [vmem:[#allocation8 + $0x20] sm:$0xff] %v278
    %295 = vst [vmem:[#allocation8 + $0x28] sm:$0xff] %v279
    %296 = vst [vmem:[#allocation8 + $0x30] sm:$0xff] %v280
    %297 = vst [vmem:[#allocation8 + $0x38] sm:$0xff] %v281
    %298 = vst [vmem:[#allocation8 + $0x40] sm:$0xff] %v282
    %299 = vst [vmem:[#allocation8 + $0x48] sm:$0xff] %v283
    %300 = vst [vmem:[#allocation8 + $0x50] sm:$0xff] %v284
    %301 = vst [vmem:[#allocation8 + $0x58] sm:$0xff] %v285
    %302 = vst [vmem:[#allocation8 + $0x60] sm:$0xff] %v286
    %303 = vst [vmem:[#allocation8 + $0x68] sm:$0xff] %v287
    %304 = vst [vmem:[#allocation8 + $0x70] sm:$0xff] %v288
    %305 = vst [vmem:[#allocation8 + $0x78] sm:$0xff] %v289
    %p306 = scmp.eq.s32.totalorder 0, 0
    // Predicated region
    $region26: #{tpu_custom_call.1} parent=1 // pred_check
      %p307 = pneg %p306
    $region27: #{tpu_custom_call.1} parent=1 // pred_check_branch
      %309 = sbr.rel (%p307) target = $region29
    $region28: #{tpu_custom_call.1} parent=1 // pred_region
      %vm310 = vcmask 7168
      %311 = vst.msk [vmem:[%s4] sm:$0xff] %vm310, 0.0
      %312 = vst.msk [vmem:[%s4 + $0x8] sm:$0xff] %vm310, 0.0
      %313 = vst.msk [vmem:[%s4 + $0x10] sm:$0xff] %vm310, 0.0
      %314 = vst.msk [vmem:[%s4 + $0x18] sm:$0xff] %vm310, 0.0
      %315 = vst.msk [vmem:[%s4 + $0x20] sm:$0xff] %vm310, 0.0
      %316 = vst.msk [vmem:[%s4 + $0x28] sm:$0xff] %vm310, 0.0
      %317 = vst.msk [vmem:[%s4 + $0x30] sm:$0xff] %vm310, 0.0
      %318 = vst.msk [vmem:[%s4 + $0x38] sm:$0xff] %vm310, 0.0
      %319 = vst.msk [vmem:[%s4 + $0x40] sm:$0xff] %vm310, 0.0
      %320 = vst.msk [vmem:[%s4 + $0x48] sm:$0xff] %vm310, 0.0
      %321 = vst.msk [vmem:[%s4 + $0x50] sm:$0xff] %vm310, 0.0
      %322 = vst.msk [vmem:[%s4 + $0x58] sm:$0xff] %vm310, 0.0
      %323 = vst.msk [vmem:[%s4 + $0x60] sm:$0xff] %vm310, 0.0
      %324 = vst.msk [vmem:[%s4 + $0x68] sm:$0xff] %vm310, 0.0
      %325 = vst.msk [vmem:[%s4 + $0x70] sm:$0xff] %vm310, 0.0
      %326 = vst.msk [vmem:[%s4 + $0x78] sm:$0xff] %vm310, 0.0
    $region29: #{tpu_custom_call.1} parent=1 // pred_fallthru
      _
    %v327 = vld [vmem:[%s4] sm:$0xff]
    %v328 = vld [vmem:[%s4 + $0x8] sm:$0xff]
    %v329 = vld [vmem:[%s4 + $0x10] sm:$0xff]
    %v330 = vld [vmem:[%s4 + $0x18] sm:$0xff]
    %v331 = vld [vmem:[%s4 + $0x20] sm:$0xff]
    %v332 = vld [vmem:[%s4 + $0x28] sm:$0xff]
    %v333 = vld [vmem:[%s4 + $0x30] sm:$0xff]
    %v334 = vld [vmem:[%s4 + $0x38] sm:$0xff]
    %v335 = vld [vmem:[%s4 + $0x40] sm:$0xff]
    %v336 = vld [vmem:[%s4 + $0x48] sm:$0xff]
    %v337 = vld [vmem:[%s4 + $0x50] sm:$0xff]
    %v338 = vld [vmem:[%s4 + $0x58] sm:$0xff]
    %v339 = vld [vmem:[%s4 + $0x60] sm:$0xff]
    %v340 = vld [vmem:[%s4 + $0x68] sm:$0xff]
    %v341 = vld [vmem:[%s4 + $0x70] sm:$0xff]
    %v342 = vld [vmem:[%s4 + $0x78] sm:$0xff]
    %v343 = vsel %vm98, 1.0, 0.0
    %v344 = vsel %vm99, 1.0, 0.0
    %v345 = vsel %vm100, 1.0, 0.0
    %v346 = vsel %vm101, 1.0, 0.0
    %v347 = vsel %vm102, 1.0, 0.0
    %v348 = vsel %vm103, 1.0, 0.0
    %v349 = vsel %vm104, 1.0, 0.0
    %v350 = vsel %vm105, 1.0, 0.0
    %v351 = vsel %vm106, 1.0, 0.0
    %v352 = vsel %vm107, 1.0, 0.0
    %v353 = vsel %vm108, 1.0, 0.0
    %v354 = vsel %vm109, 1.0, 0.0
    %v355 = vsel %vm110, 1.0, 0.0
    %v356 = vsel %vm111, 1.0, 0.0
    %v357 = vsel %vm112, 1.0, 0.0
    %v358 = vsel %vm113, 1.0, 0.0
    %v359 = vadd.f32 %v274, %v343
    %v360 = vadd.f32 %v275, %v344
    %v361 = vadd.f32 %v276, %v345
    %v362 = vadd.f32 %v277, %v346
    %v363 = vadd.f32 %v278, %v347
    %v364 = vadd.f32 %v279, %v348
    %v365 = vadd.f32 %v280, %v349
    %v366 = vadd.f32 %v281, %v350
    %v367 = vadd.f32 %v282, %v351
    %v368 = vadd.f32 %v283, %v352
    %v369 = vadd.f32 %v284, %v353
    %v370 = vadd.f32 %v285, %v354
    %v371 = vadd.f32 %v286, %v355
    %v372 = vadd.f32 %v287, %v356
    %v373 = vadd.f32 %v288, %v357
    %v374 = vadd.f32 %v289, %v358
    %375 = vadd.xlane.f32.xlu0 %v359
    %v376 = vpop.xlane.xlu0 %375
    %377 = vadd.xlane.f32.xlu0 %v360
    %v378 = vpop.xlane.xlu0 %377
    %379 = vadd.xlane.f32.xlu0 %v361
    %v380 = vpop.xlane.xlu0 %379
    %381 = vadd.xlane.f32.xlu0 %v362
    %v382 = vpop.xlane.xlu0 %381
    %383 = vadd.xlane.f32.xlu0 %v363
    %v384 = vpop.xlane.xlu0 %383
    %385 = vadd.xlane.f32.xlu0 %v364
    %v386 = vpop.xlane.xlu0 %385
    %387 = vadd.xlane.f32.xlu0 %v365
    %v388 = vpop.xlane.xlu0 %387
    %389 = vadd.xlane.f32.xlu0 %v366
    %v390 = vpop.xlane.xlu0 %389
    %391 = vadd.xlane.f32.xlu0 %v367
    %v392 = vpop.xlane.xlu0 %391
    %393 = vadd.xlane.f32.xlu0 %v368
    %v394 = vpop.xlane.xlu0 %393
    %395 = vadd.xlane.f32.xlu0 %v369
    %v396 = vpop.xlane.xlu0 %395
    %397 = vadd.xlane.f32.xlu0 %v370
    %v398 = vpop.xlane.xlu0 %397
    %399 = vadd.xlane.f32.xlu0 %v371
    %v400 = vpop.xlane.xlu0 %399
    %401 = vadd.xlane.f32.xlu0 %v372
    %v402 = vpop.xlane.xlu0 %401
    %403 = vadd.xlane.f32.xlu0 %v373
    %v404 = vpop.xlane.xlu0 %403
    %405 = vadd.xlane.f32.xlu0 %v374
    %v406 = vpop.xlane.xlu0 %405
    %v407 = vadd.f32 %v327, %v376
    %v408 = vadd.f32 %v328, %v378
    %v409 = vadd.f32 %v329, %v380
    %v410 = vadd.f32 %v330, %v382
    %v411 = vadd.f32 %v331, %v384
    %v412 = vadd.f32 %v332, %v386
    %v413 = vadd.f32 %v333, %v388
    %v414 = vadd.f32 %v334, %v390
    %v415 = vadd.f32 %v335, %v392
    %v416 = vadd.f32 %v336, %v394
    %v417 = vadd.f32 %v337, %v396
    %v418 = vadd.f32 %v338, %v398
    %v419 = vadd.f32 %v339, %v400
    %v420 = vadd.f32 %v340, %v402
    %v421 = vadd.f32 %v341, %v404
    %v422 = vadd.f32 %v342, %v406
    %vm423 = vcmask 7168
    %424 = vst.msk [vmem:[%s4] sm:$0xff] %vm423, %v407
    %425 = vst.msk [vmem:[%s4 + $0x8] sm:$0xff] %vm423, %v408
    %426 = vst.msk [vmem:[%s4 + $0x10] sm:$0xff] %vm423, %v409
    %427 = vst.msk [vmem:[%s4 + $0x18] sm:$0xff] %vm423, %v410
    %428 = vst.msk [vmem:[%s4 + $0x20] sm:$0xff] %vm423, %v411
    %429 = vst.msk [vmem:[%s4 + $0x28] sm:$0xff] %vm423, %v412
    %430 = vst.msk [vmem:[%s4 + $0x30] sm:$0xff] %vm423, %v413
    %431 = vst.msk [vmem:[%s4 + $0x38] sm:$0xff] %vm423, %v414
    %432 = vst.msk [vmem:[%s4 + $0x40] sm:$0xff] %vm423, %v415
    %433 = vst.msk [vmem:[%s4 + $0x48] sm:$0xff] %vm423, %v416
    %434 = vst.msk [vmem:[%s4 + $0x50] sm:$0xff] %vm423, %v417
    %435 = vst.msk [vmem:[%s4 + $0x58] sm:$0xff] %vm423, %v418
    %436 = vst.msk [vmem:[%s4 + $0x60] sm:$0xff] %vm423, %v419
    %437 = vst.msk [vmem:[%s4 + $0x68] sm:$0xff] %vm423, %v420
    %438 = vst.msk [vmem:[%s4 + $0x70] sm:$0xff] %vm423, %v421
    %439 = vst.msk [vmem:[%s4 + $0x78] sm:$0xff] %vm423, %v422
    // Predicated region
    $region30: #{tpu_custom_call.1} parent=1 // pred_check
      _
    $region31: #{tpu_custom_call.1} parent=1 // pred_check_branch
      %441 = sbr.rel (0) target = $region33
    $region32: #{tpu_custom_call.1} parent=1 // pred_region
      %s443 = ssub.s32 2048, 2048
      %444 = vsyncadd [#allocation4], %s443
      %s445 = sshll.u32 [#allocation8], 4
      %s446 = int_to_ptr.vmem [resolvable:$true] %s445
      %451 = dma.vmem_to_hbm [thread:$0]  %s446, 2048, %s3, [#allocation4], 128, 128, 8
    $region33: #{tpu_custom_call.1} parent=1 // pred_fallthru
      _
    // Predicated region
    $region34: #{tpu_custom_call.1} parent=1 // pred_check
      _
    $region35: #{tpu_custom_call.1} parent=1 // pred_check_branch
      %453 = sbr.rel (0) target = $region37
    $region36: #{tpu_custom_call.1} parent=1 // pred_region
      _
    $region37: #{tpu_custom_call.1} parent=1 // pred_fallthru
      _
    // Predicated region
    $region38: #{tpu_custom_call.1} parent=1 // pred_check
      _
    $region39: #{tpu_custom_call.1} parent=1 // pred_check_branch
      %455 = sbr.rel (0) target = $region41
    $region40: #{tpu_custom_call.1} parent=1 // pred_region
      %456 = dma.done [#allocation4], 2048
    $region41: #{tpu_custom_call.1} parent=1 // pred_fallthru
      _
    // Predicated region
    $region42: #{tpu_custom_call.1} parent=1 // pred_check
      _
    $region43: #{tpu_custom_call.1} parent=1 // pred_check_branch
      %458 = sbr.rel (0) target = $region45
    $region44: #{tpu_custom_call.1} parent=1 // pred_region
      _
    $region45: #{tpu_custom_call.1} parent=1 // pred_fallthru
      _
    %459 = vsyncpa [#allocation3], 1
    %460 = vsyncpa [#allocation6], 1
    %461 = vsyncpa [#allocation4], 1

</llo_original>
